<compile_context>
chip_gen: v6e
topology: v6e:2x2x1
jax: 0.10.0
libtpu: 0.0.40
codegen_flags: <defaults>
</compile_context>

<pallas_src>
import functools

import jax
import jax.numpy as jnp
from jax.experimental import pallas as pl
from jax.experimental.pallas import tpu as pltpu


def _round_up(x, m):
    return ((x + m - 1) // m) * m


def _cdiv(a, b):
    return -(-a // b)


def _global_push_plus_kernel(
    fn_ref,      # (TILE_B, Dp)  matmul dtype VMEM — normalized features, resident over C
    centt_ref,   # (Dp, TILE_C)  matmul dtype VMEM — centers^T, streamed class tile
    padj_ref,    # (TILE_B, 1)   f32 VMEM — (margin - pos_sim), -1e30 for padded rows
    sum_ref,     # (TILE_B, 1)   f32 VMEM out — per-row sum of positive losses
    cnt_ref,     # (TILE_B, 1)   f32 VMEM out — per-row count of positive losses
):
    ci = pl.program_id(1)

    @pl.when(ci == 0)
    def _init():
        sum_ref[...] = jnp.zeros_like(sum_ref)
        cnt_ref[...] = jnp.zeros_like(cnt_ref)

    # sim = fn @ centers^T tile, fed to the MXU in its natural [M,K]x[K,N]
    # layout; accumulate in f32.
    sim = jax.lax.dot_general(
        fn_ref[...], centt_ref[...],
        dimension_numbers=(((1,), (0,)), ((), ())),
        preferred_element_type=jnp.float32)          # (TILE_B, TILE_C) f32

    # losses = margin + sim - pos_sim  (margin folded into padj in the wrapper)
    losses = sim + padj_ref[...]
    pred = losses > 0.0
    sum_ref[...] += jnp.sum(jnp.where(pred, losses, 0.0), axis=1, keepdims=True)
    cnt_ref[...] += jnp.sum(jnp.where(pred, 1.0, 0.0), axis=1, keepdims=True)


@functools.partial(jax.jit, static_argnames=("tile_b", "tile_c", "matmul_dtype"))
def global_push_plus_loss(features, centers, labels, margin, *,
                          tile_b=None, tile_c=None, matmul_dtype=jnp.bfloat16):
    """GlobalPushPlus loss via a tiled Pallas TPU kernel (streams centers over C)."""
    features = features.astype(jnp.float32)
    centers = centers.astype(jnp.float32)
    labels = labels.astype(jnp.int32)
    margin = jnp.asarray(margin, jnp.float32)

    B, D = features.shape
    C, Dc = centers.shape
    assert D == Dc, (D, Dc)

    # ---- cheap O(B*D) prework in XLA: normalize, cast once, pos similarity --
    sumsq = jnp.sum(features * features, axis=1, keepdims=True)
    fn = features * jax.lax.rsqrt(jnp.maximum(sumsq, 1e-24))     # F.normalize, eps=1e-12

    fn_m = fn.astype(matmul_dtype)
    cent_m = centers.astype(matmul_dtype)

    # pos_sim from the SAME quantized values the kernel matmuls, so the
    # analytic self-column correction below is (near-)exact.
    # TODO(synk): PyTorch would raise on out-of-range labels; we clip instead.
    bcent = jnp.take(cent_m, jnp.clip(labels, 0, C - 1), axis=0).astype(jnp.float32)
    pos_sim = jnp.sum(fn_m.astype(jnp.float32) * bcent, axis=1)   # (B,)
    padj = margin - pos_sim                                       # losses = sim + padj

    # ---- device-aware tile selection -----------------------------------------
    mbytes = jnp.dtype(matmul_dtype).itemsize
    sublane = 16 if mbytes < 4 else 8
    Dp = _round_up(D, 128)

    try:
        vmem_cap = int(pltpu.get_tpu_info().vmem_capacity_bytes)
    except Exception:
        vmem_cap = 64 * 1024 * 1024           # conservative (v7x-sized) fallback
    budget = int(0.45 * vmem_cap)

    if tile_b is None:
        # Aim for >= 2 batch blocks so the "parallel" axis feeds both v7x cores.
        tile_b = _round_up(max(_cdiv(B, 2), sublane), sublane)
        tile_b = min(tile_b, 512)
    else:
        tile_b = _round_up(tile_b, sublane)
    Bp = _round_up(B, tile_b)
    num_b = Bp // tile_b

    if tile_c is None:
        fixed = (2 * tile_b * Dp * mbytes        # double-buffered fn block
                 + 2 * tile_b * 128 * 4          # padj block (lane-padded)
                 + 2 * 2 * tile_b * 128 * 4)     # two resident (tile_b,1) outputs
        per_col = 2 * Dp * mbytes + 4 * tile_b * 4   # centers column + f32 temporaries
        avail = max(budget - fixed, per_col * 128)
        tile_c = max(128, (avail // per_col) // 128 * 128)
        tile_c = min(tile_c, _round_up(C, 128), 4096)
    else:
        tile_c = _round_up(tile_c, 128)
    Cp = _round_up(C, tile_c)
    num_c = Cp // tile_c

    # ---- pad / layout ---------------------------------------------------------
    fn_p = jnp.pad(fn_m, ((0, Bp - B), (0, Dp - D)))
    cent_t = jnp.pad(cent_m.T, ((0, Dp - D), (0, Cp - C)))        # (Dp, Cp)
    padj_p = jnp.pad(padj, (0, Bp - B), constant_values=-1e30).reshape(Bp, 1)

    vmem_est = (
        2 * tile_b * Dp * mbytes        # fn block
        + 2 * Dp * tile_c * mbytes      # centers tile (double-buffered)
        + 2 * tile_b * 128 * 4          # padj block
        + 2 * 2 * tile_b * 128 * 4      # resident outputs
        + 4 * tile_b * tile_c * 4       # sim / losses / pred temporaries
        + (2 << 20))                    # headroom
    vmem_limit = int(min(max(vmem_est, 32 * 1024 * 1024), int(0.9 * vmem_cap)))

    part_sum, part_cnt = pl.pallas_call(
        _global_push_plus_kernel,
        out_shape=(jax.ShapeDtypeStruct((Bp, 1), jnp.float32),
                   jax.ShapeDtypeStruct((Bp, 1), jnp.float32)),
        grid=(num_b, num_c),
        in_specs=[
            pl.BlockSpec((tile_b, Dp), lambda bi, ci: (bi, 0)),   # normalized features
            pl.BlockSpec((Dp, tile_c), lambda bi, ci: (0, ci)),   # centers^T (streamed)
            pl.BlockSpec((tile_b, 1), lambda bi, ci: (bi, 0)),    # margin - pos_sim
        ],
        out_specs=(
            pl.BlockSpec((tile_b, 1), lambda bi, ci: (bi, 0)),
            pl.BlockSpec((tile_b, 1), lambda bi, ci: (bi, 0)),
        ),
        compiler_params=pltpu.CompilerParams(
            dimension_semantics=("parallel", "arbitrary"),
            vmem_limit_bytes=vmem_limit),
        cost_estimate=pl.CostEstimate(
            flops=2 * Bp * Cp * Dp + 5 * Bp * Cp,
            transcendentals=0,
            bytes_accessed=(num_b * Cp * Dp * mbytes   # centers re-streamed per batch block
                            + Bp * Dp * mbytes + Bp * 4 + 2 * Bp * 4)),
    )(fn_p, cent_t, padj_p)

    total_sum = jnp.sum(part_sum)
    total_cnt = jnp.sum(part_cnt)

    # Analytic self-class removal: at the label column sim == pos_sim, so each
    # real row contributed exactly `margin` (> 0.15) to the sum and 1 to the
    # count.  (With bf16 feed, sim_self vs pos_sim differ only by f32
    # summation-order rounding since both use the same quantized values.)
    total_sum = total_sum - B * margin
    total_cnt = total_cnt - B

    # Padded class columns have all-zero centers => sim == 0 exactly there, so
    # each real row contributed relu(margin - pos_sim) / indicator per padded
    # column; subtract that exactly.  (Padded rows contribute nothing: padj=-1e30.)
    pad_cols = Cp - C
    if pad_cols > 0:
        total_sum = total_sum - pad_cols * jnp.sum(jnp.maximum(padj, 0.0))
        total_cnt = total_cnt - pad_cols * jnp.sum((padj > 0.0).astype(jnp.float32))

    return jnp.where(total_cnt > 0.5,
                     total_sum / jnp.maximum(total_cnt, 1.0),
                     0.0)


class GlobalPushPlusPallas:
    """Stateful wrapper mirroring the PyTorch module's margin schedule."""

    def __init__(self, margin=0.6):
        self.min_margin = 0.15
        self.max_margin = margin
        self.num_calls = 0

    def __call__(self, features, centers, labels, **kwargs):
        self.num_calls += 1
        margin = self.min_margin + float(self.num_calls) / 40000.0 * (
            self.max_margin - self.min_margin)
        margin = min(margin, self.max_margin)
        return global_push_plus_loss(
            jnp.asarray(features, jnp.float32),
            jnp.asarray(centers, jnp.float32),
            jnp.asarray(labels, jnp.int32),
            jnp.float32(margin),
            **kwargs)


def _reference(features, centers, labels, margin):
    # Pure-JAX reference for sanity checking (mirrors the PyTorch forward).
    f = features / jnp.maximum(
        jnp.linalg.norm(features, axis=1, keepdims=True), 1e-12)
    batch_centers = centers[labels]
    pos = 1.0 - jnp.sum(f * batch_centers, axis=1)
    neg = 1.0 - f @ centers.T
    losses = margin + pos[:, None] - neg
    diff = labels[:, None] != jnp.arange(centers.shape[0])[None, :]
    valid = (diff & (losses > 0.0)).astype(jnp.float32)
    nv = jnp.sum(valid)
    return jnp.where(nv > 0, jnp.sum(losses * valid) / nv, 0.0)


if __name__ == "__main__":
    key = jax.random.PRNGKey(0)
    k1, k2, k3 = jax.random.split(key, 3)

    B, C, D = 8, 4, 32  # batch, num classes/centers, embedding dim
    features = jax.random.normal(k1, (B, D), dtype=jnp.float32)
    centers = jax.random.normal(k2, (C, D), dtype=jnp.float32)
    centers = centers / jnp.linalg.norm(centers, axis=1, keepdims=True)
    labels = jax.random.randint(k3, (B,), 0, C, dtype=jnp.int32)

    loss_mod = GlobalPushPlusPallas(margin=0.6)
    loss = jax.block_until_ready(loss_mod(features, centers, labels))

    margin = min(0.15 + 1.0 / 40000.0 * (0.6 - 0.15), 0.6)
    ref = _reference(features, centers, labels, margin)

    # Default path feeds the MXU in bf16: similarities carry O(bf16 eps) error
    # and hinge-boundary pairs can flip, so use a documented loose tolerance.
    assert bool(jnp.isfinite(loss)), loss
    assert jnp.allclose(loss, ref, atol=1e-1, rtol=1e-1), (loss, ref)

    # f32 feed path matches the pure-JAX reference tightly.
    loss_f32 = jax.block_until_ready(
        global_push_plus_loss(features, centers, labels, jnp.float32(margin),
                              matmul_dtype=jnp.float32))
    assert jnp.allclose(loss_f32, ref, atol=3e-4, rtol=3e-4), (loss_f32, ref)

    print("KERNEL_OK")
</pallas_src>

<mosaic_0001>
module attributes {stable_mosaic.version = 11 : i64} {
  func.func @_global_push_plus_kernel(%arg0: i32, %arg1: i32, %arg2: memref<16x128xbf16, #tpu.memory_space<vmem>>, %arg3: memref<128x128xbf16, #tpu.memory_space<vmem>>, %arg4: memref<16x1xf32, #tpu.memory_space<vmem>>, %arg5: memref<16x1xf32, #tpu.memory_space<vmem>>, %arg6: memref<16x1xf32, #tpu.memory_space<vmem>>) attributes {dimension_semantics = [#tpu.dimension_semantics<parallel>, #tpu.dimension_semantics<arbitrary>], iteration_bounds = array<i64: 1, 1>, scalar_prefetch = 0 : i64, scratch_operands = 0 : i64, tpu.core_type = #tpu.core_type<tc>, window_params = [{transform_indices = @transform_0, window_bounds = array<i64: 16, 128>}, {transform_indices = @transform_1, window_bounds = array<i64: 128, 128>}, {transform_indices = @transform_2, window_bounds = array<i64: 16, 1>}, {transform_indices = @transform_3, window_bounds = array<i64: 16, 1>}, {transform_indices = @transform_4, window_bounds = array<i64: 16, 1>}]} {
    %c0_i32 = arith.constant 0 : i32
    %0 = arith.cmpi eq, %arg1, %c0_i32 : i32
    %1 = arith.extui %0 : i1 to i32
    %c0_i32_0 = arith.constant 0 : i32
    %2 = arith.cmpi ne, %1, %c0_i32_0 : i32
    scf.if %2 {
      %cst_20 = arith.constant 0.000000e+00 : f32
      %26 = vector.broadcast %cst_20 : f32 to vector<16x1xf32>
      %c0_21 = arith.constant 0 : index
      %c0_22 = arith.constant 0 : index
      %27 = vector.load %arg5[%c0_21, %c0_22] : memref<16x1xf32, #tpu.memory_space<vmem>>, vector<16x1xf32>
      tpu.vector_store %arg5[%c0_21, %c0_22], %26 {strides = array<i32>} : memref<16x1xf32, #tpu.memory_space<vmem>>, vector<16x1xf32>,
      %cst_23 = arith.constant 0.000000e+00 : f32
      %28 = vector.broadcast %cst_23 : f32 to vector<16x1xf32>
      %c0_24 = arith.constant 0 : index
      %c0_25 = arith.constant 0 : index
      %29 = vector.load %arg6[%c0_24, %c0_25] : memref<16x1xf32, #tpu.memory_space<vmem>>, vector<16x1xf32>
      tpu.vector_store %arg6[%c0_24, %c0_25], %28 {strides = array<i32>} : memref<16x1xf32, #tpu.memory_space<vmem>>, vector<16x1xf32>,
    } else {
    }
    %c0 = arith.constant 0 : index
    %c0_1 = arith.constant 0 : index
    %3 = vector.load %arg2[%c0, %c0_1] : memref<16x128xbf16, #tpu.memory_space<vmem>>, vector<16x128xbf16>
    %c0_2 = arith.constant 0 : index
    %c0_3 = arith.constant 0 : index
    %4 = vector.load %arg3[%c0_2, %c0_3] : memref<128x128xbf16, #tpu.memory_space<vmem>>, vector<128x128xbf16>
    %cst = arith.constant dense<0.000000e+00> : vector<16x128xf32>
    %5 = tpu.matmul %3, %4, %cst {dimension_numbers = #tpu.dot_dimension_numbers<[1], [0], [0], [1], [0, 0, 1, 1], [], []>} : vector<16x128xbf16>, vector<128x128xbf16>, vector<16x128xf32> -> vector<16x128xf32>
    %c0_4 = arith.constant 0 : index
    %c0_5 = arith.constant 0 : index
    %6 = vector.load %arg4[%c0_4, %c0_5] : memref<16x1xf32, #tpu.memory_space<vmem>>, vector<16x1xf32>
    %7 = vector.broadcast %6 : vector<16x1xf32> to vector<16x128xf32>
    %8 = arith.addf %5, %7 : vector<16x128xf32>
    %cst_6 = arith.constant 0.000000e+00 : f32
    %9 = vector.broadcast %cst_6 : f32 to vector<16x128xf32>
    %10 = arith.cmpf ogt, %8, %9 : vector<16x128xf32>
    %c0_7 = arith.constant 0 : index
    %c0_8 = arith.constant 0 : index
    %11 = vector.load %arg5[%c0_7, %c0_8] : memref<16x1xf32, #tpu.memory_space<vmem>>, vector<16x1xf32>
    %cst_9 = arith.constant 0.000000e+00 : f32
    %12 = vector.broadcast %cst_9 : f32 to vector<16x128xf32>
    %13 = arith.select %10, %8, %12 : vector<16x128xi1>, vector<16x128xf32>
    %cst_10 = arith.constant dense<0.000000e+00> : vector<16xf32>
    %14 = vector.multi_reduction <add>, %13, %cst_10 [1] : vector<16x128xf32> to vector<16xf32>
    %15 = vector.shape_cast %14 : vector<16xf32> to vector<16x1xf32>
    %16 = arith.addf %11, %15 : vector<16x1xf32>
    %c0_11 = arith.constant 0 : index
    %c0_12 = arith.constant 0 : index
    %17 = vector.load %arg5[%c0_11, %c0_12] : memref<16x1xf32, #tpu.memory_space<vmem>>, vector<16x1xf32>
    tpu.vector_store %arg5[%c0_11, %c0_12], %16 {strides = array<i32>} : memref<16x1xf32, #tpu.memory_space<vmem>>, vector<16x1xf32>,
    %c0_13 = arith.constant 0 : index
    %c0_14 = arith.constant 0 : index
    %18 = vector.load %arg6[%c0_13, %c0_14] : memref<16x1xf32, #tpu.memory_space<vmem>>, vector<16x1xf32>
    %cst_15 = arith.constant 1.000000e+00 : f32
    %cst_16 = arith.constant 0.000000e+00 : f32
    %19 = vector.broadcast %cst_15 : f32 to vector<16x128xf32>
    %20 = vector.broadcast %cst_16 : f32 to vector<16x128xf32>
    %21 = arith.select %10, %19, %20 : vector<16x128xi1>, vector<16x128xf32>
    %cst_17 = arith.constant dense<0.000000e+00> : vector<16xf32>
    %22 = vector.multi_reduction <add>, %21, %cst_17 [1] : vector<16x128xf32> to vector<16xf32>
    %23 = vector.shape_cast %22 : vector<16xf32> to vector<16x1xf32>
    %24 = arith.addf %18, %23 : vector<16x1xf32>
    %c0_18 = arith.constant 0 : index
    %c0_19 = arith.constant 0 : index
    %25 = vector.load %arg6[%c0_18, %c0_19] : memref<16x1xf32, #tpu.memory_space<vmem>>, vector<16x1xf32>
    tpu.vector_store %arg6[%c0_18, %c0_19], %24 {strides = array<i32>} : memref<16x1xf32, #tpu.memory_space<vmem>>, vector<16x1xf32>,
    return
  }
  func.func @transform_0(%arg0: i32, %arg1: i32) -> (i32, i32) {
    %c0_i32 = arith.constant 0 : i32
    %c0_i32_0 = arith.constant 0 : i32
    return %arg0, %c0_i32 : i32, i32
  }
  func.func @transform_1(%arg0: i32, %arg1: i32) -> (i32, i32) {
    %c0_i32 = arith.constant 0 : i32
    %c0_i32_0 = arith.constant 0 : i32
    return %c0_i32, %arg1 : i32, i32
  }
  func.func @transform_2(%arg0: i32, %arg1: i32) -> (i32, i32) {
    %c0_i32 = arith.constant 0 : i32
    %c0_i32_0 = arith.constant 0 : i32
    return %arg0, %c0_i32 : i32, i32
  }
  func.func @transform_3(%arg0: i32, %arg1: i32) -> (i32, i32) {
    %c0_i32 = arith.constant 0 : i32
    %c0_i32_0 = arith.constant 0 : i32
    return %arg0, %c0_i32 : i32, i32
  }
  func.func @transform_4(%arg0: i32, %arg1: i32) -> (i32, i32) {
    %c0_i32 = arith.constant 0 : i32
    %c0_i32_0 = arith.constant 0 : i32
    return %arg0, %c0_i32 : i32, i32
  }
}

</mosaic_0001>

<llo_original>
// kernel: global_push_plus_loss.1
$region0: #{global_push_plus_loss.1}
  #allocation0 [shape = 'u32[]', space=smem, size = 0x4, offset = 0x4, fixed_abs, tag = 'smem constant byte address 0x4 - core index']
  #allocation1 [shape = 'u32[144,128]{1,0:T(1,128)}', space=vmem, size = 0x12000, scoped, tag = 'internal scratch']
  %s0 = inlined_call_operand.vmem [shape: bf16[16,128], index: 0, kind: input, shape index: {}]
  %s1 = inlined_call_operand.vmem [shape: bf16[128,128], index: 1, kind: input, shape index: {}]
  %s2 = inlined_call_operand.vmem [shape: f32[16,1], index: 2, kind: input, shape index: {}]
  %s3 = inlined_call_operand.vmem [shape: f32[16,1], index: 3, kind: output, shape index: {0}]
  %s4 = inlined_call_operand.vmem [shape: f32[16,1], index: 4, kind: output, shape index: {1}]
  %5 = xla_tuple %s3, %s4
  %s6 = sld [smem:[#allocation0]]
  $region34: #{global_push_plus_loss.1} parent=0
    _
  %s8 = ssub.s32 1, %s6
  %s9 = scalar_select 0, %s8, %s6
  // Predicated region
  $region2: #{global_push_plus_loss.1} parent=0 // pred_check
    _
  $region3: #{global_push_plus_loss.1} parent=0 // pred_check_branch
    %11 = sbr.rel (0) target = $region5
  $region4: #{global_push_plus_loss.1} parent=0 // pred_region
    _
  $region5: #{global_push_plus_loss.1} parent=0 // pred_fallthru
    _
  // Predicated region
  $region6: #{global_push_plus_loss.1} parent=0 // pred_check
    _
  $region7: #{global_push_plus_loss.1} parent=0 // pred_check_branch
    %13 = sbr.rel (0) target = $region9
  $region8: #{global_push_plus_loss.1} parent=0 // pred_region
    _
  $region9: #{global_push_plus_loss.1} parent=0 // pred_fallthru
    _
  // Predicated region
  $region10: #{global_push_plus_loss.1} parent=0 // pred_check
    _
  $region11: #{global_push_plus_loss.1} parent=0 // pred_check_branch
    %15 = sbr.rel (0) target = $region13
  $region12: #{global_push_plus_loss.1} parent=0 // pred_region
    _
  $region13: #{global_push_plus_loss.1} parent=0 // pred_fallthru
    _
  %p17 = scmp.eq.s32.totalorder 0, 0
  // Predicated region
  $region14: #{global_push_plus_loss.1} parent=0 // pred_check
    %p18 = pneg %p17
  $region15: #{global_push_plus_loss.1} parent=0 // pred_check_branch
    %20 = sbr.rel (%p18) target = $region17
  $region16: #{global_push_plus_loss.1} parent=0 // pred_region
    %vm21 = vcmask 7168
    %22 = vst.msk [vmem:[%s3] sm:$0xff] %vm21, 0.0
    %23 = vst.msk [vmem:[%s3 + $0x8] sm:$0xff] %vm21, 0.0
    %24 = vst.msk [vmem:[%s4] sm:$0xff] %vm21, 0.0
    %25 = vst.msk [vmem:[%s4 + $0x8] sm:$0xff] %vm21, 0.0
  $region17: #{global_push_plus_loss.1} parent=0 // pred_fallthru
    _
  %v26 = vld [vmem:[%s0] sm:$0xf]
  %v27 = vld [vmem:[%s0 + $0x4] sm:$0xf]
  %v28 = vld [vmem:[%s1] sm:$0xf]
  %v29 = vld [vmem:[%s1 + $0x4] sm:$0xf]
  %v30 = vld [vmem:[%s1 + $0x8] sm:$0xf]
  %v31 = vld [vmem:[%s1 + $0xc] sm:$0xf]
  %v32 = vld [vmem:[%s1 + $0x10] sm:$0xf]
  %v33 = vld [vmem:[%s1 + $0x14] sm:$0xf]
  %v34 = vld [vmem:[%s1 + $0x18] sm:$0xf]
  %v35 = vld [vmem:[%s1 + $0x1c] sm:$0xf]
  %v36 = vld [vmem:[%s1 + $0x20] sm:$0xf]
  %v37 = vld [vmem:[%s1 + $0x24] sm:$0xf]
  %v38 = vld [vmem:[%s1 + $0x28] sm:$0xf]
  %v39 = vld [vmem:[%s1 + $0x2c] sm:$0xf]
  %v40 = vld [vmem:[%s1 + $0x30] sm:$0xf]
  %v41 = vld [vmem:[%s1 + $0x34] sm:$0xf]
  %v42 = vld [vmem:[%s1 + $0x38] sm:$0xf]
  %v43 = vld [vmem:[%s1 + $0x3c] sm:$0xf]
  %v44 = vld [vmem:[%s2] sm:$0xff]
  %v45 = vld [vmem:[%s2 + $0x8] sm:$0xff]
  %47 = vset.pattern.permute.xlu0 0
  %48 = vperm.xlu0 %47, %v44
  %v49 = vpop.permute.xlu0 %48
  %52 = vset.pattern.permute.xlu0 0
  %53 = vperm.xlu0 %52, %v45
  %v54 = vpop.permute.xlu0 %53
  %v58 = vunpack.c.l.b16 %v26
  %v59 = vunpack.c.l.b16 %v27
  %v60 = vpack.c.b16 %v59, %v58
  %v78 = vunpack.c.l.b16 %v28
  %v79 = vunpack.c.l.b16 %v29
  %v80 = vunpack.c.l.b16 %v30
  %v81 = vunpack.c.l.b16 %v31
  %v82 = vunpack.c.l.b16 %v32
  %v83 = vunpack.c.l.b16 %v33
  %v84 = vunpack.c.l.b16 %v34
  %v85 = vunpack.c.l.b16 %v35
  %v86 = vunpack.c.l.b16 %v36
  %v87 = vunpack.c.l.b16 %v37
  %v88 = vunpack.c.l.b16 %v38
  %v89 = vunpack.c.l.b16 %v39
  %v90 = vunpack.c.l.b16 %v40
  %v91 = vunpack.c.l.b16 %v41
  %v92 = vunpack.c.l.b16 %v42
  %v93 = vunpack.c.l.b16 %v43
  %v94 = vpack.c.b16 %v79, %v78
  %v95 = vpack.c.b16 %v81, %v80
  %v96 = vpack.c.b16 %v83, %v82
  %v97 = vpack.c.b16 %v85, %v84
  %v98 = vpack.c.b16 %v87, %v86
  %v99 = vpack.c.b16 %v89, %v88
  %v100 = vpack.c.b16 %v91, %v90
  %v101 = vpack.c.b16 %v93, %v92
  %110 = vmatprep.subr.bf16.mxu0 0
  %111 = vmatpush1.bf16.msra.mxu0 %v101
  %112 = vmatprep.subr.bf16.mxu0 0
  %113 = vmatpush1.bf16.msra.mxu0 %v100
  %114 = vmatprep.subr.bf16.mxu0 0
  %115 = vmatpush1.bf16.msra.mxu0 %v99
  %116 = vmatprep.subr.bf16.mxu0 0
  %117 = vmatpush1.bf16.msra.mxu0 %v98
  %118 = vmatprep.subr.bf16.mxu0 0
  %119 = vmatpush1.bf16.msra.mxu0 %v97
  %120 = vmatprep.subr.bf16.mxu0 0
  %121 = vmatpush1.bf16.msra.mxu0 %v96
  %122 = vmatprep.subr.bf16.mxu0 0
  %123 = vmatpush1.bf16.msra.mxu0 %v95
  %124 = vmatprep.subr.bf16.mxu0 0
  %125 = vmatpush1.bf16.msra.mxu0 %v94
  %126 = vmatprep.subr.bf16.mxu0 0
  %127 = vmatpush2.bf16.msra.mxu0 0
  %128 = vmatprep.subr.bf16.mxu0 0
  %129 = vmatpush2.bf16.msra.mxu0 0
  %130 = vmatprep.subr.bf16.mxu0 0
  %131 = vmatpush2.bf16.msra.mxu0 0
  %132 = vmatprep.subr.bf16.mxu0 0
  %133 = vmatpush2.bf16.msra.mxu0 0
  %134 = vmatprep.subr.bf16.mxu0 0
  %135 = vmatpush2.bf16.msra.mxu0 0
  %136 = vmatprep.subr.bf16.mxu0 0
  %137 = vmatpush2.bf16.msra.mxu0 0
  %138 = vmatprep.subr.bf16.mxu0 0
  %139 = vmatpush2.bf16.msra.mxu0 0
  %140 = vmatprep.subr.bf16.mxu0 0
  %141 = vmatpush2.bf16.msra.mxu0 0
  %142 = vmatprep.mubr.bf16.mxu0 0
  %143 = vmatmul.mubr.bf16.gmra.mxu0 %v60
  %v144 = vpop.f32.mrf.mxu0
  %v145 = vadd.f32 %v49, %v144
  %v146 = vpop.f32.mrf.mxu0
  %v147 = vpop.f32.mrf.mxu0
  %v148 = vadd.f32 %v54, %v147
  %v149 = vpop.f32.mrf.mxu0
  %150 = vdwg.mxu0
  %vm151 = vcmp.gt.f32.partialorder %v145, 0.0
  %vm152 = vcmp.gt.f32.partialorder %v148, 0.0
  %v153 = vld [vmem:[%s3] sm:$0xff]
  %v154 = vld [vmem:[%s3 + $0x8] sm:$0xff]
  %v155 = vsel %vm151, %v145, 0.0
  %v156 = vsel %vm152, %v148, 0.0
  %157 = vadd.xlane.f32.xlu0 %v155
  %v158 = vpop.xlane.xlu0 %157
  %159 = vadd.xlane.f32.xlu0 %v156
  %v160 = vpop.xlane.xlu0 %159
  %v161 = vadd.f32 %v153, %v158
  %v162 = vadd.f32 %v154, %v160
  %vm163 = vcmask 7168
  %164 = vst.msk [vmem:[%s3] sm:$0xff] %vm163, %v161
  %165 = vst.msk [vmem:[%s3 + $0x8] sm:$0xff] %vm163, %v162
  %v166 = vld [vmem:[%s4] sm:$0xff]
  %v167 = vld [vmem:[%s4 + $0x8] sm:$0xff]
  %v168 = vsel %vm151, 1.0, 0.0
  %v169 = vsel %vm152, 1.0, 0.0
  %170 = vadd.xlane.f32.xlu0 %v168
  %v171 = vpop.xlane.xlu0 %170
  %172 = vadd.xlane.f32.xlu0 %v169
  %v173 = vpop.xlane.xlu0 %172
  %v174 = vadd.f32 %v166, %v171
  %v175 = vadd.f32 %v167, %v173
  %176 = vst.msk [vmem:[%s4] sm:$0xff] %vm163, %v174
  %177 = vst.msk [vmem:[%s4 + $0x8] sm:$0xff] %vm163, %v175
  // Predicated region
  $region18: #{global_push_plus_loss.1} parent=0 // pred_check
    _
  $region19: #{global_push_plus_loss.1} parent=0 // pred_check_branch
    %179 = sbr.rel (0) target = $region21
  $region20: #{global_push_plus_loss.1} parent=0 // pred_region
    _
  $region21: #{global_push_plus_loss.1} parent=0 // pred_fallthru
    _
  // Predicated region
  $region22: #{global_push_plus_loss.1} parent=0 // pred_check
    _
  $region23: #{global_push_plus_loss.1} parent=0 // pred_check_branch
    %181 = sbr.rel (0) target = $region25
  $region24: #{global_push_plus_loss.1} parent=0 // pred_region
    _
  $region25: #{global_push_plus_loss.1} parent=0 // pred_fallthru
    _
  // Predicated region
  $region26: #{global_push_plus_loss.1} parent=0 // pred_check
    _
  $region27: #{global_push_plus_loss.1} parent=0 // pred_check_branch
    %183 = sbr.rel (0) target = $region29
  $region28: #{global_push_plus_loss.1} parent=0 // pred_region
    _
  $region29: #{global_push_plus_loss.1} parent=0 // pred_fallthru
    _
  // Predicated region
  $region30: #{global_push_plus_loss.1} parent=0 // pred_check
    _
  $region31: #{global_push_plus_loss.1} parent=0 // pred_check_branch
    %185 = sbr.rel (0) target = $region33
  $region32: #{global_push_plus_loss.1} parent=0 // pred_region
    _
  $region33: #{global_push_plus_loss.1} parent=0 // pred_fallthru
    _

</llo_original>
